<compile_context>
chip_gen: v7x
topology: tpu7x:2x2x1
jax: 0.10.0
libtpu: 0.0.40
codegen_flags: <defaults>
</compile_context>

<pallas_src>
from functools import partial

import jax
import jax.numpy as jnp
from jax import lax
from jax.experimental import pallas as pl
from jax.experimental.pallas import tpu as pltpu

D_IN = 128
D_OUT = 128
EPS = 1e-12  # torch.nn.functional.normalize default


def _round_up(n, m):
    return ((n + m - 1) // m) * m


def header_kernel(x_ref, w_ref, o_ref):
    # x_ref: (TM, D_IN), w_ref: (D_OUT, D_IN) [PyTorch layout], o_ref: (TM, D_OUT)
    x = x_ref[...]
    if x.dtype != jnp.float32:
        x = x.astype(jnp.float32)
    w = w_ref[...]
    if w.dtype != jnp.float32:
        w = w.astype(jnp.float32)

    # First L2 normalization: x / clamp_min(||x||, eps) == x * rsqrt(clamp_min(sum_sq, eps^2))
    inv_x = lax.rsqrt(jnp.maximum(jnp.sum(x * x, axis=-1, keepdims=True), EPS * EPS))
    x_hat = x * inv_x

    # Linear (bias=False): y = x_hat @ W.T (contract x last dim with W last dim; no transpose op)
    y = lax.dot_general(
        x_hat, w,
        dimension_numbers=(((1,), (1,)), ((), ())),
        preferred_element_type=jnp.float32,
    )

    # Second L2 normalization.
    inv_y = lax.rsqrt(jnp.maximum(jnp.sum(y * y, axis=-1, keepdims=True), EPS * EPS))
    o_ref[...] = (y * inv_y).astype(o_ref.dtype)


@partial(jax.jit, static_argnames=("tm",))
def header_forward(x, w, *, tm=4096):
    """x: (B, 128), w: (128, 128) nn.Linear weight in (out, in) layout."""
    B, d = x.shape
    assert d == D_IN, f"expected last dim {D_IN}, got {d}"
    assert w.shape == (D_OUT, D_IN), f"expected weight shape {(D_OUT, D_IN)}, got {w.shape}"

    # Tile: multiple of 8 sublanes, capped by tm and by half the (rounded-up) batch so that
    # B > 8 always yields >= 2 grid steps (v7x megacore sharding). No padding of the batch:
    # the last block may be partial; Pallas masks its store and rows are independent.
    half = _round_up(pl.cdiv(B, 2), 8)
    tm_eff = max(8, min(tm, half, _round_up(B, 8)))
    grid = pl.cdiv(B, tm_eff)

    # Double-buffered in + out tiles plus the resident weight. Only pass an explicit VMEM
    # limit when we'd exceed v5e's 16 MiB default scoped budget; cap below v7x's 64 MiB
    # physical per-TC VMEM.
    itemsize_in = jnp.dtype(x.dtype).itemsize
    vmem_bytes = (2 * tm_eff * D_IN * itemsize_in
                  + 2 * tm_eff * D_OUT * itemsize_in
                  + 2 * D_OUT * D_IN * jnp.dtype(w.dtype).itemsize)
    vmem_limit = None
    if vmem_bytes > 14 * 1024 * 1024:
        vmem_limit = min(_round_up(int(vmem_bytes * 1.25), 1 << 20), 48 * 1024 * 1024)

    return pl.pallas_call(
        header_kernel,
        out_shape=jax.ShapeDtypeStruct((B, D_OUT), x.dtype),
        grid_spec=pltpu.PrefetchScalarGridSpec(
            num_scalar_prefetch=0,
            grid=(grid,),
            in_specs=[
                pl.BlockSpec((tm_eff, D_IN), lambda i: (i, 0)),
                # Constant index_map -> 64 KiB weight tile DMA'd once, stays resident in VMEM.
                pl.BlockSpec((D_OUT, D_IN), lambda i: (0, 0)),
            ],
            out_specs=pl.BlockSpec((tm_eff, D_OUT), lambda i: (i, 0)),
        ),
        compiler_params=pltpu.CompilerParams(
            dimension_semantics=("parallel",),
            vmem_limit_bytes=vmem_limit,
        ),
    )(x, w)


def reference_forward(x, w):
    x = x.astype(jnp.float32)
    w = w.astype(jnp.float32)
    xn = x / jnp.maximum(jnp.linalg.norm(x, axis=-1, keepdims=True), EPS)
    y = xn @ w.T
    return y / jnp.maximum(jnp.linalg.norm(y, axis=-1, keepdims=True), EPS)


if __name__ == "__main__":
    key = jax.random.PRNGKey(0)
    kx, kw, kx2, kx3 = jax.random.split(key, 4)

    # Deterministic init matching nn.Linear(128, 128, bias=False):
    # uniform(-1/sqrt(in), 1/sqrt(in)), weight shape (out, in).
    bound = 1.0 / jnp.sqrt(jnp.float32(D_IN))
    w = jax.random.uniform(kw, (D_OUT, D_IN), dtype=jnp.float32,
                           minval=-bound, maxval=bound)

    # Small batch (single grid step, tile == batch).
    B = 8
    x = jax.random.normal(kx, (B, D_IN), dtype=jnp.float32)
    out = jax.block_until_ready(header_forward(x, w))
    ref = reference_forward(x, w)
    assert out.shape == (B, D_OUT)
    assert jnp.allclose(out, ref, atol=1e-5, rtol=1e-5), "mismatch vs reference (B=8)"

    # Non-multiple batch (exercises the masked partial-last-block path, 2 grid steps).
    B2 = 13
    x2 = jax.random.normal(kx2, (B2, D_IN), dtype=jnp.float32)
    out2 = jax.block_until_ready(header_forward(x2, w))
    ref2 = reference_forward(x2, w)
    assert out2.shape == (B2, D_OUT)
    assert jnp.allclose(out2, ref2, atol=1e-5, rtol=1e-5), "mismatch vs reference (B=13)"

    # Larger odd batch with multiple full tiles + a partial one (grid > 2).
    B3 = 300
    x3 = jax.random.normal(kx3, (B3, D_IN), dtype=jnp.float32)
    out3 = jax.block_until_ready(header_forward(x3, w, tm=64))
    ref3 = reference_forward(x3, w)
    assert out3.shape == (B3, D_OUT)
    assert jnp.allclose(out3, ref3, atol=1e-5, rtol=1e-5), "mismatch vs reference (B=300)"

    print("KERNEL_OK")
</pallas_src>

<mosaic_0001>
module attributes {stable_mosaic.version = 11 : i64} {
  func.func @header_kernel(%arg0: i32, %arg1: memref<8x128xf32, #tpu.memory_space<vmem>>, %arg2: memref<128x128xf32, #tpu.memory_space<vmem>>, %arg3: memref<8x128xf32, #tpu.memory_space<vmem>>) attributes {dimension_semantics = [#tpu.dimension_semantics<parallel>], iteration_bounds = array<i64: 1>, scalar_prefetch = 0 : i64, scratch_operands = 0 : i64, tpu.core_type = #tpu.core_type<tc>, window_params = [{transform_indices = @transform_0, window_bounds = array<i64: 8, 128>}, {pipeline_mode = #tpu.pipeline_mode<synchronous>, transform_indices = @transform_1, window_bounds = array<i64: 128, 128>}, {transform_indices = @transform_2, window_bounds = array<i64: 8, 128>}]} {
    %c0 = arith.constant 0 : index
    %c0_0 = arith.constant 0 : index
    %0 = vector.load %arg1[%c0, %c0_0] : memref<8x128xf32, #tpu.memory_space<vmem>>, vector<8x128xf32>
    %c0_1 = arith.constant 0 : index
    %c0_2 = arith.constant 0 : index
    %1 = vector.load %arg2[%c0_1, %c0_2] : memref<128x128xf32, #tpu.memory_space<vmem>>, vector<128x128xf32>
    %2 = arith.mulf %0, %0 : vector<8x128xf32>
    %cst = arith.constant dense<0.000000e+00> : vector<8xf32>
    %3 = vector.multi_reduction <add>, %2, %cst [1] : vector<8x128xf32> to vector<8xf32>
    %4 = vector.shape_cast %3 : vector<8xf32> to vector<8x1xf32>
    %cst_3 = arith.constant 1.000000e-24 : f32
    %5 = vector.broadcast %cst_3 : f32 to vector<8x1xf32>
    %6 = arith.maximumf %4, %5 : vector<8x1xf32>
    %7 = math.rsqrt %6 : vector<8x1xf32>
    %8 = vector.broadcast %7 : vector<8x1xf32> to vector<8x128xf32>
    %9 = arith.mulf %0, %8 : vector<8x128xf32>
    %cst_4 = arith.constant dense<0.000000e+00> : vector<8x128xf32>
    %10 = tpu.matmul %9, %1, %cst_4 {dimension_numbers = #tpu.dot_dimension_numbers<[1], [1], [0], [0], [0, 0, 1, 0], [], []>} : vector<8x128xf32>, vector<128x128xf32>, vector<8x128xf32> -> vector<8x128xf32>
    %11 = arith.mulf %10, %10 : vector<8x128xf32>
    %cst_5 = arith.constant dense<0.000000e+00> : vector<8xf32>
    %12 = vector.multi_reduction <add>, %11, %cst_5 [1] : vector<8x128xf32> to vector<8xf32>
    %13 = vector.shape_cast %12 : vector<8xf32> to vector<8x1xf32>
    %cst_6 = arith.constant 1.000000e-24 : f32
    %14 = vector.broadcast %cst_6 : f32 to vector<8x1xf32>
    %15 = arith.maximumf %13, %14 : vector<8x1xf32>
    %16 = math.rsqrt %15 : vector<8x1xf32>
    %17 = vector.broadcast %16 : vector<8x1xf32> to vector<8x128xf32>
    %18 = arith.mulf %10, %17 : vector<8x128xf32>
    %c0_7 = arith.constant 0 : index
    %c0_8 = arith.constant 0 : index
    %19 = vector.load %arg3[%c0_7, %c0_8] : memref<8x128xf32, #tpu.memory_space<vmem>>, vector<8x128xf32>
    tpu.vector_store %arg3[%c0_7, %c0_8], %18 {strides = array<i32>} : memref<8x128xf32, #tpu.memory_space<vmem>>, vector<8x128xf32>,
    return
  }
  func.func @transform_0(%arg0: i32) -> (i32, i32) {
    %c0_i32 = arith.constant 0 : i32
    %c0_i32_0 = arith.constant 0 : i32
    return %arg0, %c0_i32 : i32, i32
  }
  func.func @transform_1(%arg0: i32) -> (i32, i32) {
    %c0_i32 = arith.constant 0 : i32
    %c0_i32_0 = arith.constant 0 : i32
    %c0_i32_1 = arith.constant 0 : i32
    return %c0_i32, %c0_i32_0 : i32, i32
  }
  func.func @transform_2(%arg0: i32) -> (i32, i32) {
    %c0_i32 = arith.constant 0 : i32
    %c0_i32_0 = arith.constant 0 : i32
    return %arg0, %c0_i32 : i32, i32
  }
}

</mosaic_0001>

<llo_original>
// kernel: header_forward.1
$region0: #{header_forward.1}
  #allocation0 [shape = 'u32[]', space=smem, size = 0x4, offset = 0x4, fixed_abs, tag = 'smem constant byte address 0x4 - core index']
  #allocation1 [shape = 'u32[144,128]{1,0:T(1,128)}', space=vmem, size = 0x12000, scoped, tag = 'internal scratch']
  %s0 = inlined_call_operand.hbm [shape: f32[8,128], index: 0, kind: input, shape index: {}]
  %s1 = inlined_call_operand.hbm [shape: f32[128,128], index: 1, kind: input, shape index: {}]
  %s2 = inlined_call_operand.hbm [shape: f32[8,128], index: 2, kind: output, shape index: {}]
  %s3 = sld [smem:[#allocation0]]
  $region26: #{header_forward.1} parent=0
    _
  %s5 = ssub.s32 1, %s3
  %s6 = scalar_select 0, %s5, %s3
  $region1: #{header_forward.1} parent=0
    #allocation2 [shape = 'u8[4096]{0}', space=vmem, size = 0x1000, scoped, tag = 'input window, operand 0, single buffered']
    #allocation3 [shape = 's32[1]{0}', space=sflag, size = 0x4, scoped, tag = 'scoped memory for header_forward.1']
    #allocation4 [shape = 's32[1]{0}', space=sflag, size = 0x4, scoped, tag = 'scoped memory for header_forward.1']
    #allocation5 [shape = 'u8[65536]{0}', space=vmem, size = 0x10000, scoped, tag = 'input window, operand 1, single buffered']
    #allocation6 [shape = 's32[1]{0}', space=sflag, size = 0x4, scoped, tag = 'scoped memory for header_forward.1']
    #allocation7 [shape = 'u8[4096]{0}', space=vmem, size = 0x1000, scoped, tag = 'output window, operand 0, single buffered']
    %7 = vsyncpa [#allocation3], 0
    %8 = vsyncpa [#allocation6], 0
    %9 = vsyncpa [#allocation4], 0
    // Predicated region
    $region2: #{header_forward.1} parent=1 // pred_check
      _
    $region3: #{header_forward.1} parent=1 // pred_check_branch
      %11 = sbr.rel (0) target = $region5
    $region4: #{header_forward.1} parent=1 // pred_region
      %s13 = ssub.s32 128, 128
      %14 = vsyncadd [#allocation3], %s13
      %s16 = sshll.u32 [#allocation2], 4
      %s17 = int_to_ptr.vmem [resolvable:$true] %s16
      %19 = dma.hbm_to_vmem [thread:$0]  %s0, 128, %s17, [#allocation3]
    $region5: #{header_forward.1} parent=1 // pred_fallthru
      _
    // Predicated region
    $region6: #{header_forward.1} parent=1 // pred_check
      _
    $region7: #{header_forward.1} parent=1 // pred_check_branch
      %21 = sbr.rel (0) target = $region9
    $region8: #{header_forward.1} parent=1 // pred_region
      %s23 = ssub.s32 2048, 2048
      %24 = vsyncadd [#allocation6], %s23
      %s25 = sshll.u32 [#allocation5], 4
      %s26 = int_to_ptr.vmem [resolvable:$true] %s25
      %31 = dma.hbm_to_vmem [thread:$0]  %s1, 2048, %s26, [#allocation6], 128, 128, 8
    $region9: #{header_forward.1} parent=1 // pred_fallthru
      _
    // Predicated region
    $region10: #{header_forward.1} parent=1 // pred_check
      _
    $region11: #{header_forward.1} parent=1 // pred_check_branch
      %33 = sbr.rel (0) target = $region13
    $region12: #{header_forward.1} parent=1 // pred_region
      %34 = dma.done [#allocation3], 128
    $region13: #{header_forward.1} parent=1 // pred_fallthru
      _
    // Predicated region
    $region14: #{header_forward.1} parent=1 // pred_check
      _
    $region15: #{header_forward.1} parent=1 // pred_check_branch
      %36 = sbr.rel (0) target = $region17
    $region16: #{header_forward.1} parent=1 // pred_region
      %37 = dma.done [#allocation6], 2048
    $region17: #{header_forward.1} parent=1 // pred_fallthru
      _
    %v38 = vld [vmem:[#allocation2] sm:$0xff]
    %v39 = vld [vmem:[#allocation5] sm:$0xff]
    %v40 = vld [vmem:[#allocation5 + $0x8] sm:$0xff]
    %v41 = vld [vmem:[#allocation5 + $0x10] sm:$0xff]
    %v42 = vld [vmem:[#allocation5 + $0x18] sm:$0xff]
    %v43 = vld [vmem:[#allocation5 + $0x20] sm:$0xff]
    %v44 = vld [vmem:[#allocation5 + $0x28] sm:$0xff]
    %v45 = vld [vmem:[#allocation5 + $0x30] sm:$0xff]
    %v46 = vld [vmem:[#allocation5 + $0x38] sm:$0xff]
    %v47 = vld [vmem:[#allocation5 + $0x40] sm:$0xff]
    %v48 = vld [vmem:[#allocation5 + $0x48] sm:$0xff]
    %v49 = vld [vmem:[#allocation5 + $0x50] sm:$0xff]
    %v50 = vld [vmem:[#allocation5 + $0x58] sm:$0xff]
    %v51 = vld [vmem:[#allocation5 + $0x60] sm:$0xff]
    %v52 = vld [vmem:[#allocation5 + $0x68] sm:$0xff]
    %v53 = vld [vmem:[#allocation5 + $0x70] sm:$0xff]
    %v54 = vld [vmem:[#allocation5 + $0x78] sm:$0xff]
    %v55 = vmul.f32 %v38, %v38
    %56 = vadd.xlane.f32.xlu0 %v55
    %v57 = vpop.xlane.xlu0 %56
    %v58 = vmax.f32 %v57, 1e-24
    %v59 = vrsqrt.pop %v58
    %v60 = vmul.f32 %v38, %v59
    %61 = vmatprep.subr.mxu0 0.0
    %62 = vmatpush1.xpose.msra.mxu0 %v39
    %63 = vmatprep.subr.mxu0 0.0
    %64 = vmatpush1.xpose.msra.mxu0 %v40
    %65 = vmatprep.subr.mxu0 0.0
    %66 = vmatpush1.xpose.msra.mxu0 %v41
    %67 = vmatprep.subr.mxu0 0.0
    %68 = vmatpush1.xpose.msra.mxu0 %v42
    %69 = vmatprep.subr.mxu0 0.0
    %70 = vmatpush1.xpose.msra.mxu0 %v43
    %71 = vmatprep.subr.mxu0 0.0
    %72 = vmatpush1.xpose.msra.mxu0 %v44
    %73 = vmatprep.subr.mxu0 0.0
    %74 = vmatpush1.xpose.msra.mxu0 %v45
    %75 = vmatprep.subr.mxu0 0.0
    %76 = vmatpush1.xpose.msra.mxu0 %v46
    %77 = vmatprep.subr.mxu0 0.0
    %78 = vmatpush1.xpose.msra.mxu0 %v47
    %79 = vmatprep.subr.mxu0 0.0
    %80 = vmatpush1.xpose.msra.mxu0 %v48
    %81 = vmatprep.subr.mxu0 0.0
    %82 = vmatpush1.xpose.msra.mxu0 %v49
    %83 = vmatprep.subr.mxu0 0.0
    %84 = vmatpush1.xpose.msra.mxu0 %v50
    %85 = vmatprep.subr.mxu0 0.0
    %86 = vmatpush1.xpose.msra.mxu0 %v51
    %87 = vmatprep.subr.mxu0 0.0
    %88 = vmatpush1.xpose.msra.mxu0 %v52
    %89 = vmatprep.subr.mxu0 0.0
    %90 = vmatpush1.xpose.msra.mxu0 %v53
    %91 = vmatprep.subr.mxu0 0.0
    %92 = vmatpush1.xpose.msra.mxu0 %v54
    %93 = vmatprep.subr.mxu0 0.0
    %94 = vmatpush1.xpose.msra.mxu0 0.0
    %95 = vmatprep.subr.mxu0 0.0
    %96 = vmatpush1.xpose.msra.mxu0 0.0
    %97 = vmatprep.subr.mxu0 0.0
    %98 = vmatpush1.xpose.msra.mxu0 0.0
    %99 = vmatprep.subr.mxu0 0.0
    %100 = vmatpush1.xpose.msra.mxu0 0.0
    %101 = vmatprep.subr.mxu0 0.0
    %102 = vmatpush1.xpose.msra.mxu0 0.0
    %103 = vmatprep.subr.mxu0 0.0
    %104 = vmatpush1.xpose.msra.mxu0 0.0
    %105 = vmatprep.subr.mxu0 0.0
    %106 = vmatpush1.xpose.msra.mxu0 0.0
    %107 = vmatprep.subr.mxu0 0.0
    %108 = vmatpush1.xpose.msra.mxu0 0.0
    %109 = vmatprep.subr.mxu0 0.0
    %110 = vmatpush1.xpose.msra.mxu0 0.0
    %111 = vmatprep.subr.mxu0 0.0
    %112 = vmatpush1.xpose.msra.mxu0 0.0
    %113 = vmatprep.subr.mxu0 0.0
    %114 = vmatpush1.xpose.msra.mxu0 0.0
    %115 = vmatprep.subr.mxu0 0.0
    %116 = vmatpush1.xpose.msra.mxu0 0.0
    %117 = vmatprep.subr.mxu0 0.0
    %118 = vmatpush1.xpose.msra.mxu0 0.0
    %119 = vmatprep.subr.mxu0 0.0
    %120 = vmatpush1.xpose.msra.mxu0 0.0
    %121 = vmatprep.subr.mxu0 0.0
    %122 = vmatpush1.xpose.msra.mxu0 0.0
    %123 = vmatprep.subr.mxu0 0.0
    %124 = vmatpush1.xpose.msra.mxu0 0.0
    %125 = vmatprep.mubr.f32.mxu0 0.0
    %126 = vmatmul.mubr.f32.gmra.mrb[0].mxu0 %v60
    %v127 = vpop.f32.mrb[0].mxu0
    %v128 = vadd.f32 0.0, %v127
    %v129 = vpop.f32.mrb[0].mxu0
    %130 = vdwg.mxu0
    %v131 = vmul.f32 %v128, %v128
    %132 = vadd.xlane.f32.xlu0 %v131
    %v133 = vpop.xlane.xlu0 %132
    %v134 = vmax.f32 %v133, 1e-24
    %v135 = vrsqrt.pop %v134
    %v136 = vmul.f32 %v128, %v135
    %137 = vst [vmem:[#allocation7] sm:$0xff] %v136
    // Predicated region
    $region18: #{header_forward.1} parent=1 // pred_check
      _
    $region19: #{header_forward.1} parent=1 // pred_check_branch
      %139 = sbr.rel (0) target = $region21
    $region20: #{header_forward.1} parent=1 // pred_region
      %s141 = ssub.s32 128, 128
      %142 = vsyncadd [#allocation4], %s141
      %s144 = sshll.u32 [#allocation7], 4
      %s145 = int_to_ptr.vmem [resolvable:$true] %s144
      %147 = dma.vmem_to_hbm [thread:$0]  %s145, 128, %s2, [#allocation4]
    $region21: #{header_forward.1} parent=1 // pred_fallthru
      _
    // Predicated region
    $region22: #{header_forward.1} parent=1 // pred_check
      _
    $region23: #{header_forward.1} parent=1 // pred_check_branch
      %149 = sbr.rel (0) target = $region25
    $region24: #{header_forward.1} parent=1 // pred_region
      %150 = dma.done [#allocation4], 128
    $region25: #{header_forward.1} parent=1 // pred_fallthru
      _
    %151 = vsyncpa [#allocation3], 1
    %152 = vsyncpa [#allocation6], 1
    %153 = vsyncpa [#allocation4], 1

</llo_original>
